<compile_context>
chip_gen: v5e
topology: v5e:2x2
jax: 0.10.0
libtpu: 0.0.40
codegen_flags: <defaults>
</compile_context>

<pallas_src>
import math

import jax
import jax.numpy as jnp
from jax.experimental import pallas as pl
from jax.experimental.pallas import tpu as pltpu


def _global_stats_norm_kernel(x_ref, mean_ref, inv_ref, o_ref):
    # x_ref / o_ref: (ROW_TILE, F); mean_ref / inv_ref: (1, F) broadcast over rows.
    x = x_ref[...].astype(jnp.float32)
    o_ref[...] = ((x - mean_ref[...]) * inv_ref[...]).astype(o_ref.dtype)


def _round_up(x, m):
    return ((x + m - 1) // m) * m


def _sublane_multiple(dtype):
    # f32 -> 8, bf16 -> 16, int8/fp8 -> 32 (packed sublanes).
    return max(8, 32 // jnp.dtype(dtype).itemsize)


def _tpu_params():
    """Best-effort (target_block_bytes, vmem_cap_bytes, multi_tc) for the local chip."""
    target_block = 4 << 20      # v6e-ish default
    vmem_cap = 64 << 20         # conservative (v7x per-TC physical)
    multi_tc = False
    try:
        kind = (jax.devices()[0].device_kind or "").lower()
        if "v7" in kind:
            target_block, vmem_cap, multi_tc = 8 << 20, 64 << 20, True
        elif "v6" in kind:
            target_block, vmem_cap = 4 << 20, 128 << 20
        elif "v5 lite" in kind or "v5e" in kind or "v5lite" in kind:
            target_block, vmem_cap = 2 << 20, 128 << 20
        elif "v5" in kind or "v4" in kind:          # v5p / v4 megacore
            target_block, vmem_cap, multi_tc = 4 << 20, 128 << 20, True
    except Exception:
        pass
    try:
        cap = getattr(pltpu.get_tpu_info(), "vmem_capacity_bytes", None)
        if cap:
            vmem_cap = int(cap)
    except Exception:
        pass
    return target_block, vmem_cap, multi_tc


def _choose_row_tile(rows, f_padded, itemsize, sub, target_block_bytes, multi_tc):
    """Byte-budget row tile, rounded to the dtype sublane multiple, balanced for 2 TCs."""
    rt_budget = max(sub, (target_block_bytes // max(1, f_padded * itemsize)) // sub * sub)
    if rows <= rt_budget:
        if multi_tc and rows >= 8 * sub:
            n_steps = 4          # >=2 balanced steps per TensorCore
        elif multi_tc and rows >= 2 * sub:
            n_steps = 2
        else:
            return rows          # single full-extent block (always a legal block shape)
    else:
        n_steps = pl.cdiv(rows, rt_budget)
        if multi_tc and n_steps < 4 and rows >= 4 * sub:
            n_steps = 4          # keep both TCs busy with balanced blocks
    rt = _round_up(pl.cdiv(rows, n_steps), sub)
    if rt >= rows:
        return rows
    return rt


def global_stats_normalization(x, mean, invstddev):
    """(x - mean) * invstddev with per-feature mean / invstddev.

    x:         (..., F) float32/bf16 (any number of leading dims, e.g. (B, T, F))
    mean:      (F,)
    invstddev: (F,)
    """
    orig_shape = x.shape
    F = int(orig_shape[-1])
    rows = 1
    for d in orig_shape[:-1]:
        rows *= int(d)

    target_block, vmem_cap, multi_tc = _tpu_params()

    x2 = x.reshape(rows, F)
    mean_f = mean.astype(jnp.float32).reshape(-1)
    inv_f = invstddev.astype(jnp.float32).reshape(-1)

    # Lane-dense repack when F is not a multiple of 128 (e.g. 80 mel bins): group g
    # consecutive rows into one lane-dense row of width g*F (a multiple of 128).
    rows_eff, F_eff = rows, F
    if F % 128 != 0 and rows > 0:
        g = math.lcm(F, 128) // F
        if rows % g == 0:
            rows_eff = rows // g
            F_eff = g * F
            x2 = x2.reshape(rows_eff, F_eff)
            mean_f = jnp.tile(mean_f, g)
            inv_f = jnp.tile(inv_f, g)
    mean2d = mean_f.reshape(1, F_eff)
    inv2d = inv_f.reshape(1, F_eff)

    itemsize = jnp.dtype(x.dtype).itemsize
    sub = _sublane_multiple(x.dtype)
    f_padded = _round_up(F_eff, 128)

    rt = _choose_row_tile(rows_eff, f_padded, itemsize, sub, target_block, multi_tc)
    grid = (pl.cdiv(rows_eff, rt),)

    # VMEM budget from *padded* tile dims: double-buffered in + out blocks, stats, headroom.
    rt_padded = _round_up(rt, sub)
    io_block = rt_padded * f_padded * itemsize
    stats_block = 8 * f_padded * 4                       # (1, F) f32 pads to 8 sublanes
    vmem_bytes = 2 * (io_block + io_block) + 4 * stats_block + (2 << 20)
    vmem_cap_scoped = min(48 << 20, (vmem_cap * 3) // 5)  # leave physical headroom (v7x!)
    vmem_limit = int(min(max(vmem_bytes, 8 << 20), vmem_cap_scoped))

    cost = pl.CostEstimate(
        flops=2 * rows * F,
        transcendentals=0,
        bytes_accessed=2 * rows * F * itemsize + 2 * F_eff * 4,
    )

    out2 = pl.pallas_call(
        _global_stats_norm_kernel,
        out_shape=jax.ShapeDtypeStruct((rows_eff, F_eff), x.dtype),
        grid_spec=pltpu.PrefetchScalarGridSpec(
            num_scalar_prefetch=0,
            grid=grid,
            in_specs=[
                pl.BlockSpec((rt, F_eff), lambda i: (i, 0)),   # streamed rows
                pl.BlockSpec((1, F_eff), lambda i: (0, 0)),    # mean, VMEM-resident
                pl.BlockSpec((1, F_eff), lambda i: (0, 0)),    # invstddev, VMEM-resident
            ],
            out_specs=pl.BlockSpec((rt, F_eff), lambda i: (i, 0)),
        ),
        compiler_params=pltpu.CompilerParams(
            dimension_semantics=("parallel",),
            vmem_limit_bytes=vmem_limit,
        ),
        cost_estimate=cost,
    )(x2, mean2d, inv2d)
    return out2.reshape(orig_shape)


if __name__ == "__main__":
    key = jax.random.PRNGKey(0)
    k_x, k_m, k_s, k_x2, k_x3, k_x4 = jax.random.split(key, 6)

    # Case 1: lane-aligned (batch, time, n_features) layout.
    B, T, F = 2, 16, 128
    x = jax.random.normal(k_x, (B, T, F), dtype=jnp.float32)
    # Deterministic synthetic "global stats" (the PyTorch module reads these from json).
    mean = jax.random.normal(k_m, (F,), dtype=jnp.float32) * 0.5
    invstddev = 1.0 / (0.5 + jax.random.uniform(k_s, (F,), dtype=jnp.float32))

    out = jax.block_until_ready(global_stats_normalization(x, mean, invstddev))
    ref = (x - mean) * invstddev
    assert out.shape == (B, T, F) and out.dtype == x.dtype
    assert jnp.allclose(out, ref, atol=1e-6, rtol=1e-6)

    # Case 2: 80 mel bins with ragged rows (150 % 8 != 0 -> masked fallback path).
    B2, T2, F2 = 3, 50, 80
    x_odd = jax.random.normal(k_x2, (B2, T2, F2), dtype=jnp.float32)
    mean2, inv2 = mean[:F2], invstddev[:F2]
    out2 = jax.block_until_ready(global_stats_normalization(x_odd, mean2, inv2))
    assert jnp.allclose(out2, (x_odd - mean2) * inv2, atol=1e-6, rtol=1e-6)

    # Case 3: 80 mel bins, rows divisible by g=8 -> lane-dense repack path (8, 640).
    B3, T3, F3 = 4, 16, 80
    x_mel = jax.random.normal(k_x3, (B3, T3, F3), dtype=jnp.float32)
    out3 = jax.block_until_ready(global_stats_normalization(x_mel, mean2, inv2))
    assert out3.shape == (B3, T3, F3)
    assert jnp.allclose(out3, (x_mel - mean2) * inv2, atol=1e-6, rtol=1e-6)

    # Case 4: bf16 input (sublane multiple 16 path), f32 math inside the kernel.
    x_bf = jax.random.normal(k_x4, (2, 8, 128), dtype=jnp.float32).astype(jnp.bfloat16)
    out4 = jax.block_until_ready(global_stats_normalization(x_bf, mean, invstddev))
    ref4 = ((x_bf.astype(jnp.float32) - mean) * invstddev).astype(jnp.bfloat16)
    assert out4.dtype == jnp.bfloat16
    assert jnp.allclose(out4.astype(jnp.float32), ref4.astype(jnp.float32),
                        atol=1e-2, rtol=1e-2)

    print("KERNEL_OK")
</pallas_src>

<mosaic_0001>
module attributes {stable_mosaic.version = 11 : i64} {
  func.func @_global_stats_norm_kernel(%arg0: i32, %arg1: memref<32x128xf32, #tpu.memory_space<vmem>>, %arg2: memref<1x128xf32, #tpu.memory_space<vmem>>, %arg3: memref<1x128xf32, #tpu.memory_space<vmem>>, %arg4: memref<32x128xf32, #tpu.memory_space<vmem>>) attributes {dimension_semantics = [#tpu.dimension_semantics<parallel>], iteration_bounds = array<i64: 1>, scalar_prefetch = 0 : i64, scratch_operands = 0 : i64, tpu.core_type = #tpu.core_type<tc>, window_params = [{transform_indices = @transform_0, window_bounds = array<i64: 32, 128>}, {pipeline_mode = #tpu.pipeline_mode<synchronous>, transform_indices = @transform_1, window_bounds = array<i64: 1, 128>}, {pipeline_mode = #tpu.pipeline_mode<synchronous>, transform_indices = @transform_2, window_bounds = array<i64: 1, 128>}, {transform_indices = @transform_3, window_bounds = array<i64: 32, 128>}]} {
    %c0 = arith.constant 0 : index
    %c0_0 = arith.constant 0 : index
    %0 = vector.load %arg1[%c0, %c0_0] : memref<32x128xf32, #tpu.memory_space<vmem>>, vector<32x128xf32>
    %c0_1 = arith.constant 0 : index
    %c0_2 = arith.constant 0 : index
    %1 = vector.load %arg2[%c0_1, %c0_2] : memref<1x128xf32, #tpu.memory_space<vmem>>, vector<1x128xf32>
    %2 = vector.broadcast %1 : vector<1x128xf32> to vector<32x128xf32>
    %3 = arith.subf %0, %2 : vector<32x128xf32>
    %c0_3 = arith.constant 0 : index
    %c0_4 = arith.constant 0 : index
    %4 = vector.load %arg3[%c0_3, %c0_4] : memref<1x128xf32, #tpu.memory_space<vmem>>, vector<1x128xf32>
    %5 = vector.broadcast %4 : vector<1x128xf32> to vector<32x128xf32>
    %6 = arith.mulf %3, %5 : vector<32x128xf32>
    %c0_5 = arith.constant 0 : index
    %c0_6 = arith.constant 0 : index
    %7 = vector.load %arg4[%c0_5, %c0_6] : memref<32x128xf32, #tpu.memory_space<vmem>>, vector<32x128xf32>
    tpu.vector_store %arg4[%c0_5, %c0_6], %6 {strides = array<i32>} : memref<32x128xf32, #tpu.memory_space<vmem>>, vector<32x128xf32>,
    return
  }
  func.func @transform_0(%arg0: i32) -> (i32, i32) {
    %c0_i32 = arith.constant 0 : i32
    %c0_i32_0 = arith.constant 0 : i32
    return %arg0, %c0_i32 : i32, i32
  }
  func.func @transform_1(%arg0: i32) -> (i32, i32) {
    %c0_i32 = arith.constant 0 : i32
    %c0_i32_0 = arith.constant 0 : i32
    %c0_i32_1 = arith.constant 0 : i32
    return %c0_i32, %c0_i32_0 : i32, i32
  }
  func.func @transform_2(%arg0: i32) -> (i32, i32) {
    %c0_i32 = arith.constant 0 : i32
    %c0_i32_0 = arith.constant 0 : i32
    %c0_i32_1 = arith.constant 0 : i32
    return %c0_i32, %c0_i32_0 : i32, i32
  }
  func.func @transform_3(%arg0: i32) -> (i32, i32) {
    %c0_i32 = arith.constant 0 : i32
    %c0_i32_0 = arith.constant 0 : i32
    return %arg0, %c0_i32 : i32, i32
  }
}

</mosaic_0001>

<llo_original>
// kernel: tpu_custom_call.1
$region0: #{tpu_custom_call.1}
  #allocation0 [shape = 'u32[]', space=smem, size = 0x4, offset = 0x4, fixed_abs, tag = 'smem constant byte address 0x4 - core index']
  #allocation1 [shape = 'u32[72,128]{1,0:T(1,128)}', space=vmem, size = 0x9000, scoped, tag = 'internal scratch']
  %s0 = inlined_call_operand.hbm [shape: f32[32,128], index: 0, kind: input, shape index: {}]
  %s1 = inlined_call_operand.hbm [shape: f32[1,128], index: 1, kind: input, shape index: {}]
  %s2 = inlined_call_operand.vmem [shape: f32[1,128], index: 2, kind: input, shape index: {}]
  %s3 = inlined_call_operand.hbm [shape: f32[32,128], index: 3, kind: output, shape index: {}]
  %s4 = sld [smem:[#allocation0]]
  $region30: #{tpu_custom_call.1} parent=0
    _
  %s6 = ssub.s32 1, %s4
  %s7 = scalar_select 0, %s6, %s4
  $region1: #{tpu_custom_call.1} parent=0
    #allocation2 [shape = 'u8[16384]{0}', space=vmem, size = 0x4000, scoped, tag = 'input window, operand 0, single buffered']
    #allocation3 [shape = 's32[1]{0}', space=sflag, size = 0x4, scoped, tag = 'scoped memory for tpu_custom_call.1']
    #allocation4 [shape = 's32[1]{0}', space=sflag, size = 0x4, scoped, tag = 'scoped memory for tpu_custom_call.1']
    #allocation5 [shape = 'u8[512]{0}', space=vmem, size = 0x400, scoped, tag = 'input window, operand 1, single buffered']
    #allocation6 [shape = 's32[1]{0}', space=sflag, size = 0x4, scoped, tag = 'scoped memory for tpu_custom_call.1']
    #allocation7 [shape = 'u8[16384]{0}', space=vmem, size = 0x4000, scoped, tag = 'output window, operand 0, single buffered']
    %8 = vsyncpa [#allocation3], 0
    %9 = vsyncpa [#allocation6], 0
    %10 = vsyncpa [#allocation4], 0
    // Predicated region
    $region2: #{tpu_custom_call.1} parent=1 // pred_check
      _
    $region3: #{tpu_custom_call.1} parent=1 // pred_check_branch
      %12 = sbr.rel (0) target = $region5
    $region4: #{tpu_custom_call.1} parent=1 // pred_region
      %14 = vsyncadd [#allocation3], 0
      %s15 = sshll.u32 %s0, 4
      %s16 = int_to_ptr.hbm [resolvable:$true] %s15
      %s17 = sshll.u32 [#allocation2], 4
      %s18 = int_to_ptr.vmem [resolvable:$true] %s17
      %23 = dma.hbm_to_vmem [thread:$0]  %s16, 512, %s18, [#allocation3], 128, 128, 8
    $region5: #{tpu_custom_call.1} parent=1 // pred_fallthru
      _
    // Predicated region
    $region6: #{tpu_custom_call.1} parent=1 // pred_check
      _
    $region7: #{tpu_custom_call.1} parent=1 // pred_check_branch
      %25 = sbr.rel (0) target = $region9
    $region8: #{tpu_custom_call.1} parent=1 // pred_region
      %27 = vsyncadd [#allocation6], 0
      %s29 = sshll.u32 %s1, 4
      %s30 = int_to_ptr.hbm [resolvable:$true] %s29
      %s31 = sshll.u32 [#allocation5], 4
      %s32 = int_to_ptr.vmem [resolvable:$true] %s31
      %34 = dma.hbm_to_vmem [thread:$0]  %s30, 16, %s32, [#allocation6]
    $region9: #{tpu_custom_call.1} parent=1 // pred_fallthru
      _
    // Predicated region
    $region10: #{tpu_custom_call.1} parent=1 // pred_check
      _
    $region11: #{tpu_custom_call.1} parent=1 // pred_check_branch
      %36 = sbr.rel (0) target = $region13
    $region12: #{tpu_custom_call.1} parent=1 // pred_region
      _
    $region13: #{tpu_custom_call.1} parent=1 // pred_fallthru
      _
    // Predicated region
    $region14: #{tpu_custom_call.1} parent=1 // pred_check
      _
    $region15: #{tpu_custom_call.1} parent=1 // pred_check_branch
      %38 = sbr.rel (0) target = $region17
    $region16: #{tpu_custom_call.1} parent=1 // pred_region
      %40 = dma.done [#allocation3], 512
    $region17: #{tpu_custom_call.1} parent=1 // pred_fallthru
      _
    // Predicated region
    $region18: #{tpu_custom_call.1} parent=1 // pred_check
      _
    $region19: #{tpu_custom_call.1} parent=1 // pred_check_branch
      %42 = sbr.rel (0) target = $region21
    $region20: #{tpu_custom_call.1} parent=1 // pred_region
      %44 = dma.done [#allocation6], 16
    $region21: #{tpu_custom_call.1} parent=1 // pred_fallthru
      _
    %v45 = vld [vmem:[#allocation2] sm:$0xff]
    %v46 = vld [vmem:[#allocation2 + $0x8] sm:$0xff]
    %v47 = vld [vmem:[#allocation2 + $0x10] sm:$0xff]
    %v48 = vld [vmem:[#allocation2 + $0x18] sm:$0xff]
    %v49 = vld [vmem:[#allocation5] sm:$0x1]
    %v51 = vperm.slane %v49, 0
    %v53 = vsub.f32 %v45, %v51
    %v54 = vsub.f32 %v46, %v51
    %v55 = vsub.f32 %v47, %v51
    %v56 = vsub.f32 %v48, %v51
    %v57 = vld [vmem:[%s2] sm:$0x1]
    %v59 = vperm.slane %v57, 0
    %v61 = vmul.f32 %v53, %v59
    %v62 = vmul.f32 %v54, %v59
    %v63 = vmul.f32 %v55, %v59
    %v64 = vmul.f32 %v56, %v59
    %65 = vst [vmem:[#allocation7] sm:$0xff] %v61
    %66 = vst [vmem:[#allocation7 + $0x8] sm:$0xff] %v62
    %67 = vst [vmem:[#allocation7 + $0x10] sm:$0xff] %v63
    %68 = vst [vmem:[#allocation7 + $0x18] sm:$0xff] %v64
    // Predicated region
    $region22: #{tpu_custom_call.1} parent=1 // pred_check
      _
    $region23: #{tpu_custom_call.1} parent=1 // pred_check_branch
      %70 = sbr.rel (0) target = $region25
    $region24: #{tpu_custom_call.1} parent=1 // pred_region
      %72 = vsyncadd [#allocation4], 0
      %s73 = sshll.u32 [#allocation7], 4
      %s74 = int_to_ptr.vmem [resolvable:$true] %s73
      %s75 = sshll.u32 %s3, 4
      %s76 = int_to_ptr.hbm [resolvable:$true] %s75
      %81 = dma.vmem_to_hbm [thread:$0]  %s74, 512, %s76, [#allocation4], 128, 128, 8
    $region25: #{tpu_custom_call.1} parent=1 // pred_fallthru
      _
    // Predicated region
    $region26: #{tpu_custom_call.1} parent=1 // pred_check
      _
    $region27: #{tpu_custom_call.1} parent=1 // pred_check_branch
      %83 = sbr.rel (0) target = $region29
    $region28: #{tpu_custom_call.1} parent=1 // pred_region
      %85 = dma.done [#allocation4], 512
    $region29: #{tpu_custom_call.1} parent=1 // pred_fallthru
      _
    %86 = vsyncpa [#allocation3], 1
    %87 = vsyncpa [#allocation6], 1
    %88 = vsyncpa [#allocation4], 1

</llo_original>
